<compile_context>
chip_gen: v7x
topology: tpu7x:2x2x1
jax: 0.10.0
libtpu: 0.0.40
codegen_flags: <defaults>
</compile_context>

<pallas_src>
import functools

import jax
import jax.numpy as jnp
from jax.experimental import pallas as pl
from jax.experimental.pallas import tpu as pltpu


def masking_head_kernel(emb_ref, w1_ref, b1_ref, w2_ref, b2_ref,
                        pseudo_ref, out_ref, *, compute_dtype):
    # Cast the streamed embedding tile to bf16 on the VPU (saves the separate
    # wrapper-side HBM convert pass); f32 accumulation on the MXU.
    emb = emb_ref[...].astype(compute_dtype)
    # hidden = ReLU(emb @ W1 + b1)
    h = jnp.dot(emb, w1_ref[...], preferred_element_type=jnp.float32)
    h = jnp.maximum(h + b1_ref[...], 0.0)
    # logits = h @ W2 + b2  (second matmul also on the bf16 MXU path)
    logits = jnp.dot(h.astype(w2_ref.dtype), w2_ref[...],
                     preferred_element_type=jnp.float32)
    logits = logits + b2_ref[...]
    # mask = sigmoid(logits)  (numerically stable; exp lands on the EUP slot)
    mask = jax.nn.sigmoid(logits)
    # out = pseudo * mask   (the MaskingHead forward), f32 epilogue
    out_ref[...] = (pseudo_ref[...].astype(jnp.float32) * mask).astype(out_ref.dtype)


def masking_head(embedding, pseudo, w1, b1, w2, b2, *,
                 tile_b=None, compute_dtype=jnp.bfloat16, out_dtype=None):
    B, D = embedding.shape
    Bp_, C = pseudo.shape
    assert Bp_ == B
    H = w1.reshape(D, -1).shape[1]
    out_dtype = pseudo.dtype if out_dtype is None else out_dtype

    # Small, reused parameters: cast once to bf16 (MXU-native); biases f32.
    w1_c = w1.reshape(D, H).astype(compute_dtype)
    w2_c = w2.reshape(H, C).astype(compute_dtype)
    b1_c = jnp.asarray(b1, jnp.float32).reshape(1, H)
    b2_c = jnp.asarray(b2, jnp.float32).reshape(1, C)

    emb_sz = jnp.dtype(embedding.dtype).itemsize
    ps_sz = jnp.dtype(pseudo.dtype).itemsize
    out_sz = jnp.dtype(out_dtype).itemsize
    cdt_sz = jnp.dtype(compute_dtype).itemsize

    def vmem_bytes(tb):
        # double-buffered streamed tiles (embedding at its incoming dtype,
        # pseudo, out), single-buffered resident weights/biases, f32 temps.
        tiles = 2 * tb * (D * emb_sz + C * ps_sz + C * out_sz)
        weights = (D * H + H * C) * cdt_sz + (H + C) * 4
        interm = tb * (2 * H + 2 * C) * 4
        return tiles + weights + interm

    VMEM_BUDGET = 30 * 1024 * 1024  # safe under v7x's 64 MiB physical VMEM

    if tile_b is None:
        tile_b = 512
        while tile_b > 64 and vmem_bytes(tile_b) > VMEM_BUDGET:
            tile_b //= 2
        # Keep >= 4 grid steps when the batch allows, so each of v7x's two
        # TensorCores pipelines >= 2 blocks (DMA overlaps compute).
        while tile_b >= 256 and pl.cdiv(B, tile_b) < 4:
            tile_b //= 2
    if tile_b >= B:
        tile_b = B                        # full-extent block is always legal
    else:
        tile_b = max(8, (tile_b // 8) * 8)  # (8, 128) sublane constraint

    grid = (pl.cdiv(B, tile_b),)  # ragged last block: reads clipped, OOB writes dropped

    vmem_limit = int(min(max(vmem_bytes(tile_b) * 3 // 2, 32 * 1024 * 1024),
                         48 * 1024 * 1024))

    cost = pl.CostEstimate(
        flops=2 * B * (D * H + H * C),
        transcendentals=B * C,
        bytes_accessed=(B * D * emb_sz            # embedding (incoming dtype)
                        + B * C * ps_sz           # pseudo
                        + B * C * out_sz          # output
                        + (D * H + H * C) * cdt_sz  # bf16 weights
                        + (H + C) * 4),           # f32 biases
    )

    kernel = functools.partial(masking_head_kernel, compute_dtype=compute_dtype)

    def build_in_specs(single_buffer_weights):
        # Constant-index weight/bias blocks never change across the grid: a
        # second pipeline buffer is pure VMEM waste, so request Buffered(1).
        wkw = {"pipeline_mode": pl.Buffered(1)} if single_buffer_weights else {}
        return [
            pl.BlockSpec((tile_b, D), lambda i: (i, 0)),      # embedding tile
            pl.BlockSpec((D, H), lambda i: (0, 0), **wkw),    # W1 (resident, bf16)
            pl.BlockSpec((1, H), lambda i: (0, 0), **wkw),    # b1 (f32)
            pl.BlockSpec((H, C), lambda i: (0, 0), **wkw),    # W2 (resident, bf16)
            pl.BlockSpec((1, C), lambda i: (0, 0), **wkw),    # b2 (f32)
            pl.BlockSpec((tile_b, C), lambda i: (i, 0)),      # pseudo tile
        ]

    def run(single_buffer_weights):
        return pl.pallas_call(
            kernel,
            out_shape=jax.ShapeDtypeStruct((B, C), out_dtype),
            grid=grid,
            in_specs=build_in_specs(single_buffer_weights),
            out_specs=pl.BlockSpec((tile_b, C), lambda i: (i, 0)),
            compiler_params=pltpu.CompilerParams(
                dimension_semantics=("parallel",),
                vmem_limit_bytes=vmem_limit),
            cost_estimate=cost,
        )(embedding, w1_c, b1_c, w2_c, b2_c, pseudo)

    # TODO(synk): on v7x, evaluate pltpu.CORE_PARALLEL on the batch axis once
    # verified portable across v5e/v6e; plain "parallel" already megacore-shards.
    try:
        return run(True)          # single-buffered constant weight blocks
    except Exception:
        return run(False)         # fallback: default double-buffering


def masking_head_ref(embedding, pseudo, w1, b1, w2, b2,
                     compute_dtype=jnp.bfloat16):
    """Pure-JAX reference using the same bf16 casts as the kernel."""
    D = embedding.shape[1]
    w1m = w1.reshape(D, -1).astype(compute_dtype)
    H = w1m.shape[1]
    w2m = w2.reshape(H, -1).astype(compute_dtype)
    h = jnp.dot(embedding.astype(compute_dtype), w1m,
                preferred_element_type=jnp.float32)
    h = jnp.maximum(h + jnp.asarray(b1, jnp.float32).reshape(1, -1), 0.0)
    logits = jnp.dot(h.astype(compute_dtype), w2m,
                     preferred_element_type=jnp.float32)
    logits = logits + jnp.asarray(b2, jnp.float32).reshape(1, -1)
    mask = jax.nn.sigmoid(logits)
    return (pseudo * mask).astype(pseudo.dtype)


if __name__ == "__main__":
    # Shapes consistent with the module's forward:
    #   embedding: [B, D], pseudo: [B, C], mask: [B, C]
    # B=80 is deliberately NOT a multiple of the forced tile below, so the
    # ragged cdiv-grid path (clipped reads / dropped OOB writes) is exercised.
    B, D, H, C = 80, 128, 256, 128

    key = jax.random.PRNGKey(0)
    k_emb, k_ps, k_w1, k_b1, k_w2, k_b2 = jax.random.split(key, 6)

    embedding = jax.random.normal(k_emb, (B, D), dtype=jnp.float32)
    pseudo = jax.random.normal(k_ps, (B, C), dtype=jnp.float32)

    # Deterministic parameter init for the inner masking model (synthetic).
    w1 = jax.random.normal(k_w1, (D, H), dtype=jnp.float32) * 0.05
    b1 = jax.random.normal(k_b1, (1, H), dtype=jnp.float32) * 0.01
    w2 = jax.random.normal(k_w2, (H, C), dtype=jnp.float32) * 0.05
    b2 = jax.random.normal(k_b2, (1, C), dtype=jnp.float32) * 0.01

    ref = masking_head_ref(embedding, pseudo, w1, b1, w2, b2)

    # 1) Auto-derived tile (single full-batch block here).
    out = jax.block_until_ready(masking_head(embedding, pseudo, w1, b1, w2, b2))
    assert out.shape == pseudo.shape
    assert jnp.allclose(out, ref, atol=1e-2, rtol=1e-2), "mismatch vs reference"

    # 2) Forced small tile -> 3 grid steps with a ragged last block.
    out2 = jax.block_until_ready(
        masking_head(embedding, pseudo, w1, b1, w2, b2, tile_b=32))
    assert jnp.allclose(out2, ref, atol=1e-2, rtol=1e-2), "mismatch (ragged grid)"

    print("KERNEL_OK")
</pallas_src>

<mosaic_0001>
module attributes {stable_mosaic.version = 11 : i64} {
  func.func @masking_head_kernel(%arg0: i32, %arg1: memref<80x128xf32, #tpu.memory_space<vmem>>, %arg2: memref<128x256xbf16, #tpu.memory_space<vmem>>, %arg3: memref<1x256xf32, #tpu.memory_space<vmem>>, %arg4: memref<256x128xbf16, #tpu.memory_space<vmem>>, %arg5: memref<1x128xf32, #tpu.memory_space<vmem>>, %arg6: memref<80x128xf32, #tpu.memory_space<vmem>>, %arg7: memref<80x128xf32, #tpu.memory_space<vmem>>) attributes {dimension_semantics = [#tpu.dimension_semantics<parallel>], iteration_bounds = array<i64: 1>, scalar_prefetch = 0 : i64, scratch_operands = 0 : i64, tpu.core_type = #tpu.core_type<tc>, window_params = [{transform_indices = @transform_0, window_bounds = array<i64: 80, 128>}, {pipeline_mode = #tpu.pipeline_mode<synchronous>, transform_indices = @transform_1, window_bounds = array<i64: 128, 256>}, {pipeline_mode = #tpu.pipeline_mode<synchronous>, transform_indices = @transform_2, window_bounds = array<i64: 1, 256>}, {pipeline_mode = #tpu.pipeline_mode<synchronous>, transform_indices = @transform_3, window_bounds = array<i64: 256, 128>}, {pipeline_mode = #tpu.pipeline_mode<synchronous>, transform_indices = @transform_4, window_bounds = array<i64: 1, 128>}, {transform_indices = @transform_5, window_bounds = array<i64: 80, 128>}, {transform_indices = @transform_6, window_bounds = array<i64: 80, 128>}]} {
    %c0 = arith.constant 0 : index
    %c0_0 = arith.constant 0 : index
    %0 = vector.load %arg1[%c0, %c0_0] : memref<80x128xf32, #tpu.memory_space<vmem>>, vector<80x128xf32>
    %1 = arith.truncf %0 : vector<80x128xf32> to vector<80x128xbf16>
    %c0_1 = arith.constant 0 : index
    %c0_2 = arith.constant 0 : index
    %2 = vector.load %arg2[%c0_1, %c0_2] : memref<128x256xbf16, #tpu.memory_space<vmem>>, vector<128x256xbf16>
    %cst = arith.constant dense<0.000000e+00> : vector<80x256xf32>
    %3 = tpu.matmul %1, %2, %cst {dimension_numbers = #tpu.dot_dimension_numbers<[1], [0], [0], [1], [0, 0, 1, 1], [], []>} : vector<80x128xbf16>, vector<128x256xbf16>, vector<80x256xf32> -> vector<80x256xf32>
    %c0_3 = arith.constant 0 : index
    %c0_4 = arith.constant 0 : index
    %4 = vector.load %arg3[%c0_3, %c0_4] : memref<1x256xf32, #tpu.memory_space<vmem>>, vector<1x256xf32>
    %5 = vector.broadcast %4 : vector<1x256xf32> to vector<80x256xf32>
    %6 = arith.addf %3, %5 : vector<80x256xf32>
    %cst_5 = arith.constant 0.000000e+00 : f32
    %7 = vector.broadcast %cst_5 : f32 to vector<80x256xf32>
    %8 = arith.maximumf %6, %7 : vector<80x256xf32>
    %9 = arith.truncf %8 : vector<80x256xf32> to vector<80x256xbf16>
    %c0_6 = arith.constant 0 : index
    %c0_7 = arith.constant 0 : index
    %10 = vector.load %arg4[%c0_6, %c0_7] : memref<256x128xbf16, #tpu.memory_space<vmem>>, vector<256x128xbf16>
    %cst_8 = arith.constant dense<0.000000e+00> : vector<80x128xf32>
    %11 = tpu.matmul %9, %10, %cst_8 {dimension_numbers = #tpu.dot_dimension_numbers<[1], [0], [0], [1], [0, 0, 1, 1], [], []>} : vector<80x256xbf16>, vector<256x128xbf16>, vector<80x128xf32> -> vector<80x128xf32>
    %c0_9 = arith.constant 0 : index
    %c0_10 = arith.constant 0 : index
    %12 = vector.load %arg5[%c0_9, %c0_10] : memref<1x128xf32, #tpu.memory_space<vmem>>, vector<1x128xf32>
    %13 = vector.broadcast %12 : vector<1x128xf32> to vector<80x128xf32>
    %14 = arith.addf %11, %13 : vector<80x128xf32>
    %15 = arith.negf %14 : vector<80x128xf32>
    %16 = math.exp %15 : vector<80x128xf32>
    %cst_11 = arith.constant 1.000000e+00 : f32
    %17 = vector.broadcast %cst_11 : f32 to vector<80x128xf32>
    %18 = arith.addf %17, %16 : vector<80x128xf32>
    %19 = arith.divf %17, %18 : vector<80x128xf32>
    %c0_12 = arith.constant 0 : index
    %c0_13 = arith.constant 0 : index
    %20 = vector.load %arg6[%c0_12, %c0_13] : memref<80x128xf32, #tpu.memory_space<vmem>>, vector<80x128xf32>
    %21 = arith.mulf %20, %19 : vector<80x128xf32>
    %c0_14 = arith.constant 0 : index
    %c0_15 = arith.constant 0 : index
    %22 = vector.load %arg7[%c0_14, %c0_15] : memref<80x128xf32, #tpu.memory_space<vmem>>, vector<80x128xf32>
    tpu.vector_store %arg7[%c0_14, %c0_15], %21 {strides = array<i32>} : memref<80x128xf32, #tpu.memory_space<vmem>>, vector<80x128xf32>,
    return
  }
  func.func @transform_0(%arg0: i32) -> (i32, i32) {
    %c0_i32 = arith.constant 0 : i32
    %c0_i32_0 = arith.constant 0 : i32
    return %arg0, %c0_i32 : i32, i32
  }
  func.func @transform_1(%arg0: i32) -> (i32, i32) {
    %c0_i32 = arith.constant 0 : i32
    %c0_i32_0 = arith.constant 0 : i32
    %c0_i32_1 = arith.constant 0 : i32
    return %c0_i32, %c0_i32_0 : i32, i32
  }
  func.func @transform_2(%arg0: i32) -> (i32, i32) {
    %c0_i32 = arith.constant 0 : i32
    %c0_i32_0 = arith.constant 0 : i32
    %c0_i32_1 = arith.constant 0 : i32
    return %c0_i32, %c0_i32_0 : i32, i32
  }
  func.func @transform_3(%arg0: i32) -> (i32, i32) {
    %c0_i32 = arith.constant 0 : i32
    %c0_i32_0 = arith.constant 0 : i32
    %c0_i32_1 = arith.constant 0 : i32
    return %c0_i32, %c0_i32_0 : i32, i32
  }
  func.func @transform_4(%arg0: i32) -> (i32, i32) {
    %c0_i32 = arith.constant 0 : i32
    %c0_i32_0 = arith.constant 0 : i32
    %c0_i32_1 = arith.constant 0 : i32
    return %c0_i32, %c0_i32_0 : i32, i32
  }
  func.func @transform_5(%arg0: i32) -> (i32, i32) {
    %c0_i32 = arith.constant 0 : i32
    %c0_i32_0 = arith.constant 0 : i32
    return %arg0, %c0_i32 : i32, i32
  }
  func.func @transform_6(%arg0: i32) -> (i32, i32) {
    %c0_i32 = arith.constant 0 : i32
    %c0_i32_0 = arith.constant 0 : i32
    return %arg0, %c0_i32 : i32, i32
  }
}

module attributes {stable_mosaic.version = 11 : i64} {
  func.func @masking_head_kernel(%arg0: i32, %arg1: memref<80x128xf32, #tpu.memory_space<vmem>>, %arg2: memref<128x256xbf16, #tpu.memory_space<vmem>>, %arg3: memref<1x256xf32, #tpu.memory_space<vmem>>, %arg4: memref<256x128xbf16, #tpu.memory_space<vmem>>, %arg5: memref<1x128xf32, #tpu.memory_space<vmem>>, %arg6: memref<80x128xf32, #tpu.memory_space<vmem>>, %arg7: memref<80x128xf32, #tpu.memory_space<vmem>>) attributes {dimension_semantics = [#tpu.dimension_semantics<parallel>], iteration_bounds = array<i64: 1>, scalar_prefetch = 0 : i64, scratch_operands = 0 : i64, tpu.core_type = #tpu.core_type<tc>, window_params = [{transform_indices = @transform_0, window_bounds = array<i64: 80, 128>}, {pipeline_mode = #tpu.pipeline_mode<synchronous>, transform_indices = @transform_1, window_bounds = array<i64: 128, 256>}, {pipeline_mode = #tpu.pipeline_mode<synchronous>, transform_indices = @transform_2, window_bounds = array<i64: 1, 256>}, {pipeline_mode = #tpu.pipeline_mode<synchronous>, transform_indices = @transform_3, window_bounds = array<i64: 256, 128>}, {pipeline_mode = #tpu.pipeline_mode<synchronous>, transform_indices = @transform_4, window_bounds = array<i64: 1, 128>}, {transform_indices = @transform_5, window_bounds = array<i64: 80, 128>}, {transform_indices = @transform_6, window_bounds = array<i64: 80, 128>}]} {
    %c0 = arith.constant 0 : index
    %c0_0 = arith.constant 0 : index
    %0 = vector.load %arg1[%c0, %c0_0] : memref<80x128xf32, #tpu.memory_space<vmem>>, vector<80x128xf32>
    %1 = arith.truncf %0 : vector<80x128xf32> to vector<80x128xbf16>
    %c0_1 = arith.constant 0 : index
    %c0_2 = arith.constant 0 : index
    %2 = vector.load %arg2[%c0_1, %c0_2] : memref<128x256xbf16, #tpu.memory_space<vmem>>, vector<128x256xbf16>
    %cst = arith.constant dense<0.000000e+00> : vector<80x256xf32>
    %3 = tpu.matmul %1, %2, %cst {dimension_numbers = #tpu.dot_dimension_numbers<[1], [0], [0], [1], [0, 0, 1, 1], [], []>} : vector<80x128xbf16>, vector<128x256xbf16>, vector<80x256xf32> -> vector<80x256xf32>
    %c0_3 = arith.constant 0 : index
    %c0_4 = arith.constant 0 : index
    %4 = vector.load %arg3[%c0_3, %c0_4] : memref<1x256xf32, #tpu.memory_space<vmem>>, vector<1x256xf32>
    %5 = vector.broadcast %4 : vector<1x256xf32> to vector<80x256xf32>
    %6 = arith.addf %3, %5 : vector<80x256xf32>
    %cst_5 = arith.constant 0.000000e+00 : f32
    %7 = vector.broadcast %cst_5 : f32 to vector<80x256xf32>
    %8 = arith.maximumf %6, %7 : vector<80x256xf32>
    %9 = arith.truncf %8 : vector<80x256xf32> to vector<80x256xbf16>
    %c0_6 = arith.constant 0 : index
    %c0_7 = arith.constant 0 : index
    %10 = vector.load %arg4[%c0_6, %c0_7] : memref<256x128xbf16, #tpu.memory_space<vmem>>, vector<256x128xbf16>
    %cst_8 = arith.constant dense<0.000000e+00> : vector<80x128xf32>
    %11 = tpu.matmul %9, %10, %cst_8 {dimension_numbers = #tpu.dot_dimension_numbers<[1], [0], [0], [1], [0, 0, 1, 1], [], []>} : vector<80x256xbf16>, vector<256x128xbf16>, vector<80x128xf32> -> vector<80x128xf32>
    %c0_9 = arith.constant 0 : index
    %c0_10 = arith.constant 0 : index
    %12 = vector.load %arg5[%c0_9, %c0_10] : memref<1x128xf32, #tpu.memory_space<vmem>>, vector<1x128xf32>
    %13 = vector.broadcast %12 : vector<1x128xf32> to vector<80x128xf32>
    %14 = arith.addf %11, %13 : vector<80x128xf32>
    %15 = arith.negf %14 : vector<80x128xf32>
    %16 = math.exp %15 : vector<80x128xf32>
    %cst_11 = arith.constant 1.000000e+00 : f32
    %17 = vector.broadcast %cst_11 : f32 to vector<80x128xf32>
    %18 = arith.addf %17, %16 : vector<80x128xf32>
    %19 = arith.divf %17, %18 : vector<80x128xf32>
    %c0_12 = arith.constant 0 : index
    %c0_13 = arith.constant 0 : index
    %20 = vector.load %arg6[%c0_12, %c0_13] : memref<80x128xf32, #tpu.memory_space<vmem>>, vector<80x128xf32>
    %21 = arith.mulf %20, %19 : vector<80x128xf32>
    %c0_14 = arith.constant 0 : index
    %c0_15 = arith.constant 0 : index
    %22 = vector.load %arg7[%c0_14, %c0_15] : memref<80x128xf32, #tpu.memory_space<vmem>>, vector<80x128xf32>
    tpu.vector_store %arg7[%c0_14, %c0_15], %21 {strides = array<i32>} : memref<80x128xf32, #tpu.memory_space<vmem>>, vector<80x128xf32>,
    return
  }
  func.func @transform_0(%arg0: i32) -> (i32, i32) {
    %c0_i32 = arith.constant 0 : i32
    %c0_i32_0 = arith.constant 0 : i32
    return %arg0, %c0_i32 : i32, i32
  }
  func.func @transform_1(%arg0: i32) -> (i32, i32) {
    %c0_i32 = arith.constant 0 : i32
    %c0_i32_0 = arith.constant 0 : i32
    %c0_i32_1 = arith.constant 0 : i32
    return %c0_i32, %c0_i32_0 : i32, i32
  }
  func.func @transform_2(%arg0: i32) -> (i32, i32) {
    %c0_i32 = arith.constant 0 : i32
    %c0_i32_0 = arith.constant 0 : i32
    %c0_i32_1 = arith.constant 0 : i32
    return %c0_i32, %c0_i32_0 : i32, i32
  }
  func.func @transform_3(%arg0: i32) -> (i32, i32) {
    %c0_i32 = arith.constant 0 : i32
    %c0_i32_0 = arith.constant 0 : i32
    %c0_i32_1 = arith.constant 0 : i32
    return %c0_i32, %c0_i32_0 : i32, i32
  }
  func.func @transform_4(%arg0: i32) -> (i32, i32) {
    %c0_i32 = arith.constant 0 : i32
    %c0_i32_0 = arith.constant 0 : i32
    %c0_i32_1 = arith.constant 0 : i32
    return %c0_i32, %c0_i32_0 : i32, i32
  }
  func.func @transform_5(%arg0: i32) -> (i32, i32) {
    %c0_i32 = arith.constant 0 : i32
    %c0_i32_0 = arith.constant 0 : i32
    return %arg0, %c0_i32 : i32, i32
  }
  func.func @transform_6(%arg0: i32) -> (i32, i32) {
    %c0_i32 = arith.constant 0 : i32
    %c0_i32_0 = arith.constant 0 : i32
    return %arg0, %c0_i32 : i32, i32
  }
}

</mosaic_0001>

<llo_original>
// kernel: tpu_custom_call.1
$region0: #{tpu_custom_call.1}
  #allocation0 [shape = 'u32[]', space=smem, size = 0x4, offset = 0x4, fixed_abs, tag = 'smem constant byte address 0x4 - core index']
  #allocation1 [shape = 'u32[144,128]{1,0:T(1,128)}', space=vmem, size = 0x12000, scoped, tag = 'internal scratch']
  %s0 = inlined_call_operand.hbm [shape: f32[80,128], index: 0, kind: input, shape index: {}]
  %s1 = inlined_call_operand.hbm [shape: bf16[128,256], index: 1, kind: input, shape index: {}]
  %s2 = inlined_call_operand.vmem [shape: f32[1,256], index: 2, kind: input, shape index: {}]
  %s3 = inlined_call_operand.hbm [shape: bf16[256,128], index: 3, kind: input, shape index: {}]
  %s4 = inlined_call_operand.vmem [shape: f32[1,128], index: 4, kind: input, shape index: {}]
  %s5 = inlined_call_operand.hbm [shape: f32[80,128], index: 5, kind: input, shape index: {}]
  %s6 = inlined_call_operand.hbm [shape: f32[80,128], index: 6, kind: output, shape index: {}]
  %s7 = sld [smem:[#allocation0]]
  $region50: #{tpu_custom_call.1} parent=0
    _
  %s9 = ssub.s32 1, %s7
  %s10 = scalar_select 0, %s9, %s7
  $region1: #{tpu_custom_call.1} parent=0
    #allocation2 [shape = 'u8[40960]{0}', space=vmem, size = 0xa000, scoped, tag = 'input window, operand 0, single buffered']
    #allocation3 [shape = 's32[1]{0}', space=sflag, size = 0x4, scoped, tag = 'scoped memory for tpu_custom_call.1']
    #allocation4 [shape = 's32[1]{0}', space=sflag, size = 0x4, scoped, tag = 'scoped memory for tpu_custom_call.1']
    #allocation5 [shape = 'u8[65536]{0}', space=vmem, size = 0x10000, scoped, tag = 'input window, operand 1, single buffered']
    #allocation6 [shape = 's32[1]{0}', space=sflag, size = 0x4, scoped, tag = 'scoped memory for tpu_custom_call.1']
    #allocation7 [shape = 'u8[65536]{0}', space=vmem, size = 0x10000, scoped, tag = 'input window, operand 3, single buffered']
    #allocation8 [shape = 'u8[40960]{0}', space=vmem, size = 0xa000, scoped, tag = 'input window, operand 5, single buffered']
    #allocation9 [shape = 's32[1]{0}', space=sflag, size = 0x4, scoped, tag = 'scoped memory for tpu_custom_call.1']
    #allocation10 [shape = 'u8[40960]{0}', space=vmem, size = 0xa000, scoped, tag = 'output window, operand 0, single buffered']
    %11 = vsyncpa [#allocation3], 0
    %12 = vsyncpa [#allocation6], 0
    %13 = vsyncpa [#allocation9], 0
    %14 = vsyncpa [#allocation4], 0
    // Predicated region
    $region2: #{tpu_custom_call.1} parent=1 // pred_check
      _
    $region3: #{tpu_custom_call.1} parent=1 // pred_check_branch
      %16 = sbr.rel (0) target = $region5
    $region4: #{tpu_custom_call.1} parent=1 // pred_region
      %s18 = ssub.s32 1280, 1280
      %19 = vsyncadd [#allocation3], %s18
      %s20 = sshll.u32 [#allocation2], 4
      %s21 = int_to_ptr.vmem [resolvable:$true] %s20
      %26 = dma.hbm_to_vmem [thread:$0]  %s0, 1280, %s21, [#allocation3], 128, 128, 8
    $region5: #{tpu_custom_call.1} parent=1 // pred_fallthru
      _
    // Predicated region
    $region6: #{tpu_custom_call.1} parent=1 // pred_check
      _
    $region7: #{tpu_custom_call.1} parent=1 // pred_check_branch
      %28 = sbr.rel (0) target = $region9
    $region8: #{tpu_custom_call.1} parent=1 // pred_region
      %s30 = ssub.s32 2048, 2048
      %31 = vsyncadd [#allocation6], %s30
      %s32 = sshll.u32 [#allocation5], 4
      %s33 = int_to_ptr.vmem [resolvable:$true] %s32
      %38 = dma.hbm_to_vmem [thread:$0]  %s1, 2048, %s33, [#allocation6], 128, 128, 8
    $region9: #{tpu_custom_call.1} parent=1 // pred_fallthru
      _
    // Predicated region
    $region10: #{tpu_custom_call.1} parent=1 // pred_check
      _
    $region11: #{tpu_custom_call.1} parent=1 // pred_check_branch
      %40 = sbr.rel (0) target = $region13
    $region12: #{tpu_custom_call.1} parent=1 // pred_region
      _
    $region13: #{tpu_custom_call.1} parent=1 // pred_fallthru
      _
    // Predicated region
    $region14: #{tpu_custom_call.1} parent=1 // pred_check
      _
    $region15: #{tpu_custom_call.1} parent=1 // pred_check_branch
      %42 = sbr.rel (0) target = $region17
    $region16: #{tpu_custom_call.1} parent=1 // pred_region
      %s44 = ssub.s32 2048, 2048
      %45 = vsyncadd [#allocation6], %s44
      %s46 = sshll.u32 [#allocation7], 4
      %s47 = int_to_ptr.vmem [resolvable:$true] %s46
      %52 = dma.hbm_to_vmem [thread:$0]  %s3, 2048, %s47, [#allocation6], 64, 64, 4
    $region17: #{tpu_custom_call.1} parent=1 // pred_fallthru
      _
    // Predicated region
    $region18: #{tpu_custom_call.1} parent=1 // pred_check
      _
    $region19: #{tpu_custom_call.1} parent=1 // pred_check_branch
      %54 = sbr.rel (0) target = $region21
    $region20: #{tpu_custom_call.1} parent=1 // pred_region
      _
    $region21: #{tpu_custom_call.1} parent=1 // pred_fallthru
      _
    // Predicated region
    $region22: #{tpu_custom_call.1} parent=1 // pred_check
      _
    $region23: #{tpu_custom_call.1} parent=1 // pred_check_branch
      %56 = sbr.rel (0) target = $region25
    $region24: #{tpu_custom_call.1} parent=1 // pred_region
      %s58 = ssub.s32 1280, 1280
      %59 = vsyncadd [#allocation9], %s58
      %s60 = sshll.u32 [#allocation8], 4
      %s61 = int_to_ptr.vmem [resolvable:$true] %s60
      %66 = dma.hbm_to_vmem [thread:$0]  %s5, 1280, %s61, [#allocation9], 128, 128, 8
    $region25: #{tpu_custom_call.1} parent=1 // pred_fallthru
      _
    // Predicated region
    $region26: #{tpu_custom_call.1} parent=1 // pred_check
      _
    $region27: #{tpu_custom_call.1} parent=1 // pred_check_branch
      %68 = sbr.rel (0) target = $region29
    $region28: #{tpu_custom_call.1} parent=1 // pred_region
      %69 = dma.done [#allocation3], 1280
    $region29: #{tpu_custom_call.1} parent=1 // pred_fallthru
      _
    // Predicated region
    $region30: #{tpu_custom_call.1} parent=1 // pred_check
      _
    $region31: #{tpu_custom_call.1} parent=1 // pred_check_branch
      %71 = sbr.rel (0) target = $region33
    $region32: #{tpu_custom_call.1} parent=1 // pred_region
      %72 = dma.done [#allocation6], 2048
    $region33: #{tpu_custom_call.1} parent=1 // pred_fallthru
      _
    // Predicated region
    $region34: #{tpu_custom_call.1} parent=1 // pred_check
      _
    $region35: #{tpu_custom_call.1} parent=1 // pred_check_branch
      %74 = sbr.rel (0) target = $region37
    $region36: #{tpu_custom_call.1} parent=1 // pred_region
      %75 = dma.done [#allocation6], 2048
    $region37: #{tpu_custom_call.1} parent=1 // pred_fallthru
      _
    // Predicated region
    $region38: #{tpu_custom_call.1} parent=1 // pred_check
      _
    $region39: #{tpu_custom_call.1} parent=1 // pred_check_branch
      %77 = sbr.rel (0) target = $region41
    $region40: #{tpu_custom_call.1} parent=1 // pred_region
      %78 = dma.done [#allocation9], 1280
    $region41: #{tpu_custom_call.1} parent=1 // pred_fallthru
      _
    %v80 = vld [vmem:[#allocation2] sm:$0xff]
    %v81 = vld [vmem:[#allocation2 + $0x8] sm:$0xff]
    %v82 = vld [vmem:[#allocation2 + $0x10] sm:$0xff]
    %v83 = vld [vmem:[#allocation2 + $0x18] sm:$0xff]
    %v84 = vld [vmem:[#allocation2 + $0x20] sm:$0xff]
    %v85 = vld [vmem:[#allocation2 + $0x28] sm:$0xff]
    %v86 = vld [vmem:[#allocation2 + $0x30] sm:$0xff]
    %v87 = vld [vmem:[#allocation2 + $0x38] sm:$0xff]
    %v88 = vld [vmem:[#allocation2 + $0x40] sm:$0xff]
    %v89 = vld [vmem:[#allocation2 + $0x48] sm:$0xff]
    %v90 = vpack.c.bf16 %v81, %v80
    %v91 = vpack.c.bf16 %v83, %v82
    %v92 = vpack.c.bf16 %v85, %v84
    %v93 = vpack.c.bf16 %v87, %v86
    %v94 = vpack.c.bf16 %v89, %v88
    %v95 = vld [vmem:[#allocation5] sm:$0xff]
    %v96 = vld [vmem:[#allocation5 + $0x8] sm:$0xff]
    %v97 = vld [vmem:[#allocation5 + $0x10] sm:$0xff]
    %v98 = vld [vmem:[#allocation5 + $0x18] sm:$0xff]
    %v99 = vld [vmem:[#allocation5 + $0x20] sm:$0xff]
    %v100 = vld [vmem:[#allocation5 + $0x28] sm:$0xff]
    %v101 = vld [vmem:[#allocation5 + $0x30] sm:$0xff]
    %v102 = vld [vmem:[#allocation5 + $0x38] sm:$0xff]
    %v103 = vld [vmem:[#allocation5 + $0x40] sm:$0xff]
    %v104 = vld [vmem:[#allocation5 + $0x48] sm:$0xff]
    %v105 = vld [vmem:[#allocation5 + $0x50] sm:$0xff]
    %v106 = vld [vmem:[#allocation5 + $0x58] sm:$0xff]
    %v107 = vld [vmem:[#allocation5 + $0x60] sm:$0xff]
    %v108 = vld [vmem:[#allocation5 + $0x68] sm:$0xff]
    %v109 = vld [vmem:[#allocation5 + $0x70] sm:$0xff]
    %v110 = vld [vmem:[#allocation5 + $0x78] sm:$0xff]
    %v111 = vld [vmem:[%s2] sm:$0x3]
    %v113 = vlaneseq
    %v114 = vshrl.u32 %v113, 7
    %v115 = vsub.s32 0, %v114
    %v116 = vrot.slane %v111, %v115
    %v117 = vlaneseq
    %v118 = vshrl.u32 %v117, 7
    %v119 = vsub.s32 1, %v118
    %v120 = vrot.slane %v111, %v119
    %v139 = vunpack.c.l.b16 %v95
    %v140 = vunpack.c.h.b16 %v95
    %v141 = vunpack.c.l.b16 %v96
    %v142 = vunpack.c.h.b16 %v96
    %v143 = vunpack.c.l.b16 %v97
    %v144 = vunpack.c.h.b16 %v97
    %v145 = vunpack.c.l.b16 %v98
    %v146 = vunpack.c.h.b16 %v98
    %v147 = vunpack.c.l.b16 %v99
    %v148 = vunpack.c.h.b16 %v99
    %v149 = vunpack.c.l.b16 %v100
    %v150 = vunpack.c.h.b16 %v100
    %v151 = vunpack.c.l.b16 %v101
    %v152 = vunpack.c.h.b16 %v101
    %v153 = vunpack.c.l.b16 %v102
    %v154 = vunpack.c.h.b16 %v102
    %v155 = vunpack.c.l.b16 %v103
    %v156 = vunpack.c.h.b16 %v103
    %v157 = vunpack.c.l.b16 %v104
    %v158 = vunpack.c.h.b16 %v104
    %v159 = vunpack.c.l.b16 %v105
    %v160 = vunpack.c.h.b16 %v105
    %v161 = vunpack.c.l.b16 %v106
    %v162 = vunpack.c.h.b16 %v106
    %v163 = vunpack.c.l.b16 %v107
    %v164 = vunpack.c.h.b16 %v107
    %v165 = vunpack.c.l.b16 %v108
    %v166 = vunpack.c.h.b16 %v108
    %v167 = vunpack.c.l.b16 %v109
    %v168 = vunpack.c.h.b16 %v109
    %v169 = vunpack.c.l.b16 %v110
    %v170 = vunpack.c.h.b16 %v110
    %v171 = vpack.c.b16 %v141, %v139
    %v172 = vpack.c.b16 %v142, %v140
    %v173 = vpack.c.b16 %v145, %v143
    %v174 = vpack.c.b16 %v146, %v144
    %v175 = vpack.c.b16 %v149, %v147
    %v176 = vpack.c.b16 %v150, %v148
    %v177 = vpack.c.b16 %v153, %v151
    %v178 = vpack.c.b16 %v154, %v152
    %v179 = vpack.c.b16 %v157, %v155
    %v180 = vpack.c.b16 %v158, %v156
    %v181 = vpack.c.b16 %v161, %v159
    %v182 = vpack.c.b16 %v162, %v160
    %v183 = vpack.c.b16 %v165, %v163
    %v184 = vpack.c.b16 %v166, %v164
    %v185 = vpack.c.b16 %v169, %v167
    %v186 = vpack.c.b16 %v170, %v168
    %203 = vmatprep.subr.bf16.mxu0 %v172
    %204 = vmatpush1.bf16.msra.mxu0 %v171
    %205 = vmatprep.subr.bf16.mxu0 %v174
    %206 = vmatpush1.bf16.msra.mxu0 %v173
    %207 = vmatprep.subr.bf16.mxu0 %v176
    %208 = vmatpush1.bf16.msra.mxu0 %v175
    %209 = vmatprep.subr.bf16.mxu0 %v178
    %210 = vmatpush1.bf16.msra.mxu0 %v177
    %211 = vmatprep.subr.bf16.mxu0 %v180
    %212 = vmatpush1.bf16.msra.mxu0 %v179
    %213 = vmatprep.subr.bf16.mxu0 %v182
    %214 = vmatpush1.bf16.msra.mxu0 %v181
    %215 = vmatprep.subr.bf16.mxu0 %v184
    %216 = vmatpush1.bf16.msra.mxu0 %v183
    %217 = vmatprep.subr.bf16.mxu0 %v186
    %218 = vmatpush1.bf16.msra.mxu0 %v185
    %219 = vmatprep.subr.bf16.mxu0 0
    %220 = vmatpush1.bf16.msra.mxu0 0
    %221 = vmatprep.subr.bf16.mxu0 0
    %222 = vmatpush1.bf16.msra.mxu0 0
    %223 = vmatprep.subr.bf16.mxu0 0
    %224 = vmatpush1.bf16.msra.mxu0 0
    %225 = vmatprep.subr.bf16.mxu0 0
    %226 = vmatpush1.bf16.msra.mxu0 0
    %227 = vmatprep.subr.bf16.mxu0 0
    %228 = vmatpush1.bf16.msra.mxu0 0
    %229 = vmatprep.subr.bf16.mxu0 0
    %230 = vmatpush1.bf16.msra.mxu0 0
    %231 = vmatprep.subr.bf16.mxu0 0
    %232 = vmatpush1.bf16.msra.mxu0 0
    %233 = vmatprep.subr.bf16.mxu0 0
    %234 = vmatpush1.bf16.msra.mxu0 0
    %235 = vmatprep.mubr.bf16.mxu0 0
    %236 = vmatmul.mubr.bf16.gmra.mrb[0].mxu0 %v90
    %v237 = vpop.f32.mrb[0].mxu0
    %v238 = vadd.f32 %v116, %v237
    %v239 = vpop.f32.mrb[0].mxu0
    %v240 = vadd.f32 %v120, %v239
    %v241 = vpop.f32.mrb[0].mxu0
    %v242 = vadd.f32 %v116, %v241
    %v243 = vpop.f32.mrb[0].mxu0
    %v244 = vadd.f32 %v120, %v243
    %245 = vmatprep.mubr.bf16.mxu0 0
    %246 = vmatmul.mubr.bf16.gmra.mrb[0].mxu0 %v91
    %v247 = vpop.f32.mrb[0].mxu0
    %v248 = vadd.f32 %v116, %v247
    %v249 = vpop.f32.mrb[0].mxu0
    %v250 = vadd.f32 %v120, %v249
    %v251 = vpop.f32.mrb[0].mxu0
    %v252 = vadd.f32 %v116, %v251
    %v253 = vpop.f32.mrb[0].mxu0
    %v254 = vadd.f32 %v120, %v253
    %255 = vmatprep.mubr.bf16.mxu0 0
    %256 = vmatmul.mubr.bf16.gmra.mrb[0].mxu0 %v92
    %v257 = vpop.f32.mrb[0].mxu0
    %v258 = vadd.f32 %v116, %v257
    %v259 = vpop.f32.mrb[0].mxu0
    %v260 = vadd.f32 %v120, %v259
    %v261 = vpop.f32.mrb[0].mxu0
    %v262 = vadd.f32 %v116, %v261
    %v263 = vpop.f32.mrb[0].mxu0
    %v264 = vadd.f32 %v120, %v263
    %265 = vmatprep.mubr.bf16.mxu0 0
    %266 = vmatmul.mubr.bf16.gmra.mrb[0].mxu0 %v93
    %v267 = vpop.f32.mrb[0].mxu0
    %v268 = vadd.f32 %v116, %v267
    %v269 = vpop.f32.mrb[0].mxu0
    %v270 = vadd.f32 %v120, %v269
    %v271 = vpop.f32.mrb[0].mxu0
    %v272 = vadd.f32 %v116, %v271
    %v273 = vpop.f32.mrb[0].mxu0
    %v274 = vadd.f32 %v120, %v273
    %275 = vmatprep.mubr.bf16.mxu0 0
    %276 = vmatmul.mubr.bf16.gmra.mrb[0].mxu0 %v94
    %v277 = vpop.f32.mrb[0].mxu0
    %v278 = vadd.f32 %v116, %v277
    %v279 = vpop.f32.mrb[0].mxu0
    %v280 = vadd.f32 %v120, %v279
    %v281 = vpop.f32.mrb[0].mxu0
    %v282 = vadd.f32 %v116, %v281
    %v283 = vpop.f32.mrb[0].mxu0
    %v284 = vadd.f32 %v120, %v283
    %285 = vdwg.mxu0
    %v286 = vmax.f32 %v238, 0.0
    %v287 = vmax.f32 %v240, 0.0
    %v288 = vmax.f32 %v242, 0.0
    %v289 = vmax.f32 %v244, 0.0
    %v290 = vmax.f32 %v248, 0.0
    %v291 = vmax.f32 %v250, 0.0
    %v292 = vmax.f32 %v252, 0.0
    %v293 = vmax.f32 %v254, 0.0
    %v294 = vmax.f32 %v258, 0.0
    %v295 = vmax.f32 %v260, 0.0
    %v296 = vmax.f32 %v262, 0.0
    %v297 = vmax.f32 %v264, 0.0
    %v298 = vmax.f32 %v268, 0.0
    %v299 = vmax.f32 %v270, 0.0
    %v300 = vmax.f32 %v272, 0.0
    %v301 = vmax.f32 %v274, 0.0
    %v302 = vmax.f32 %v278, 0.0
    %v303 = vmax.f32 %v280, 0.0
    %v304 = vmax.f32 %v282, 0.0
    %v305 = vmax.f32 %v284, 0.0
    %v306 = vpack.c.bf16 %v288, %v286
    %v307 = vpack.c.bf16 %v289, %v287
    %v308 = vpack.c.bf16 %v292, %v290
    %v309 = vpack.c.bf16 %v293, %v291
    %v310 = vpack.c.bf16 %v296, %v294
    %v311 = vpack.c.bf16 %v297, %v295
    %v312 = vpack.c.bf16 %v300, %v298
    %v313 = vpack.c.bf16 %v301, %v299
    %v314 = vpack.c.bf16 %v304, %v302
    %v315 = vpack.c.bf16 %v305, %v303
    %v316 = vld [vmem:[#allocation7] sm:$0xf]
    %v317 = vld [vmem:[#allocation7 + $0x4] sm:$0xf]
    %v318 = vld [vmem:[#allocation7 + $0x8] sm:$0xf]
    %v319 = vld [vmem:[#allocation7 + $0xc] sm:$0xf]
    %v320 = vld [vmem:[#allocation7 + $0x10] sm:$0xf]
    %v321 = vld [vmem:[#allocation7 + $0x14] sm:$0xf]
    %v322 = vld [vmem:[#allocation7 + $0x18] sm:$0xf]
    %v323 = vld [vmem:[#allocation7 + $0x1c] sm:$0xf]
    %v324 = vld [vmem:[#allocation7 + $0x20] sm:$0xf]
    %v325 = vld [vmem:[#allocation7 + $0x24] sm:$0xf]
    %v326 = vld [vmem:[#allocation7 + $0x28] sm:$0xf]
    %v327 = vld [vmem:[#allocation7 + $0x2c] sm:$0xf]
    %v328 = vld [vmem:[#allocation7 + $0x30] sm:$0xf]
    %v329 = vld [vmem:[#allocation7 + $0x34] sm:$0xf]
    %v330 = vld [vmem:[#allocation7 + $0x38] sm:$0xf]
    %v331 = vld [vmem:[#allocation7 + $0x3c] sm:$0xf]
    %v332 = vld [vmem:[#allocation7 + $0x40] sm:$0xf]
    %v333 = vld [vmem:[#allocation7 + $0x44] sm:$0xf]
    %v334 = vld [vmem:[#allocation7 + $0x48] sm:$0xf]
    %v335 = vld [vmem:[#allocation7 + $0x4c] sm:$0xf]
    %v336 = vld [vmem:[#allocation7 + $0x50] sm:$0xf]
    %v337 = vld [vmem:[#allocation7 + $0x54] sm:$0xf]
    %v338 = vld [vmem:[#allocation7 + $0x58] sm:$0xf]
    %v339 = vld [vmem:[#allocation7 + $0x5c] sm:$0xf]
    %v340 = vld [vmem:[#allocation7 + $0x60] sm:$0xf]
    %v341 = vld [vmem:[#allocation7 + $0x64] sm:$0xf]
    %v342 = vld [vmem:[#allocation7 + $0x68] sm:$0xf]
    %v343 = vld [vmem:[#allocation7 + $0x6c] sm:$0xf]
    %v344 = vld [vmem:[#allocation7 + $0x70] sm:$0xf]
    %v345 = vld [vmem:[#allocation7 + $0x74] sm:$0xf]
    %v346 = vld [vmem:[#allocation7 + $0x78] sm:$0xf]
    %v347 = vld [vmem:[#allocation7 + $0x7c] sm:$0xf]
    %v348 = vld [vmem:[%s4] sm:$0x1]
    %v350 = vlaneseq
    %v351 = vshrl.u32 %v350, 7
    %v352 = vsub.s32 0, %v351
    %v353 = vrot.slane %v348, %v352
    %v387 = vunpack.c.l.b16 %v316
    %v388 = vunpack.c.l.b16 %v317
    %v389 = vunpack.c.l.b16 %v318
    %v390 = vunpack.c.l.b16 %v319
    %v391 = vunpack.c.l.b16 %v320
    %v392 = vunpack.c.l.b16 %v321
    %v393 = vunpack.c.l.b16 %v322
    %v394 = vunpack.c.l.b16 %v323
    %v395 = vunpack.c.l.b16 %v324
    %v396 = vunpack.c.l.b16 %v325
    %v397 = vunpack.c.l.b16 %v326
    %v398 = vunpack.c.l.b16 %v327
    %v399 = vunpack.c.l.b16 %v328
    %v400 = vunpack.c.l.b16 %v329
    %v401 = vunpack.c.l.b16 %v330
    %v402 = vunpack.c.l.b16 %v331
    %v403 = vunpack.c.l.b16 %v332
    %v404 = vunpack.c.l.b16 %v333
    %v405 = vunpack.c.l.b16 %v334
    %v406 = vunpack.c.l.b16 %v335
    %v407 = vunpack.c.l.b16 %v336
    %v408 = vunpack.c.l.b16 %v337
    %v409 = vunpack.c.l.b16 %v338
    %v410 = vunpack.c.l.b16 %v339
    %v411 = vunpack.c.l.b16 %v340
    %v412 = vunpack.c.l.b16 %v341
    %v413 = vunpack.c.l.b16 %v342
    %v414 = vunpack.c.l.b16 %v343
    %v415 = vunpack.c.l.b16 %v344
    %v416 = vunpack.c.l.b16 %v345
    %v417 = vunpack.c.l.b16 %v346
    %v418 = vunpack.c.l.b16 %v347
    %v419 = vpack.c.b16 %v388, %v387
    %v420 = vpack.c.b16 %v390, %v389
    %v421 = vpack.c.b16 %v392, %v391
    %v422 = vpack.c.b16 %v394, %v393
    %v423 = vpack.c.b16 %v396, %v395
    %v424 = vpack.c.b16 %v398, %v397
    %v425 = vpack.c.b16 %v400, %v399
    %v426 = vpack.c.b16 %v402, %v401
    %v427 = vpack.c.b16 %v404, %v403
    %v428 = vpack.c.b16 %v406, %v405
    %v429 = vpack.c.b16 %v408, %v407
    %v430 = vpack.c.b16 %v410, %v409
    %v431 = vpack.c.b16 %v412, %v411
    %v432 = vpack.c.b16 %v414, %v413
    %v433 = vpack.c.b16 %v416, %v415
    %v434 = vpack.c.b16 %v418, %v417
    %451 = vmatprep.subr.bf16.mxu0 0
    %452 = vmatpush1.bf16.msra.mxu0 %v419
    %453 = vmatprep.subr.bf16.mxu0 0
    %454 = vmatpush1.bf16.msra.mxu0 %v420
    %455 = vmatprep.subr.bf16.mxu0 0
    %456 = vmatpush1.bf16.msra.mxu0 %v421
    %457 = vmatprep.subr.bf16.mxu0 0
    %458 = vmatpush1.bf16.msra.mxu0 %v422
    %459 = vmatprep.subr.bf16.mxu0 0
    %460 = vmatpush1.bf16.msra.mxu0 %v423
    %461 = vmatprep.subr.bf16.mxu0 0
    %462 = vmatpush1.bf16.msra.mxu0 %v424
    %463 = vmatprep.subr.bf16.mxu0 0
    %464 = vmatpush1.bf16.msra.mxu0 %v425
    %465 = vmatprep.subr.bf16.mxu0 0
    %466 = vmatpush1.bf16.msra.mxu0 %v426
    %467 = vmatprep.subr.bf16.mxu0 0
    %468 = vmatpush1.bf16.msra.mxu0 %v427
    %469 = vmatprep.subr.bf16.mxu0 0
    %470 = vmatpush1.bf16.msra.mxu0 %v428
    %471 = vmatprep.subr.bf16.mxu0 0
    %472 = vmatpush1.bf16.msra.mxu0 %v429
    %473 = vmatprep.subr.bf16.mxu0 0
    %474 = vmatpush1.bf16.msra.mxu0 %v430
    %475 = vmatprep.subr.bf16.mxu0 0
    %476 = vmatpush1.bf16.msra.mxu0 %v431
    %477 = vmatprep.subr.bf16.mxu0 0
    %478 = vmatpush1.bf16.msra.mxu0 %v432
    %479 = vmatprep.subr.bf16.mxu0 0
    %480 = vmatpush1.bf16.msra.mxu0 %v433
    %481 = vmatprep.subr.bf16.mxu0 0
    %482 = vmatpush1.bf16.msra.mxu0 %v434
    %483 = vmatprep.mubr.bf16.mxu0 %v307
    %484 = vmatmul.mubr.bf16.gmra.mrb[0].mxu0 %v306
    %v485 = vpop.f32.mrb[0].mxu0
    %v486 = vadd.f32 %v353, %v485
    %v487 = vpop.f32.mrb[0].mxu0
    %v488 = vpop.f32.mrb[0].mxu0
    %v489 = vadd.f32 %v353, %v488
    %v490 = vpop.f32.mrb[0].mxu0
    %491 = vmatprep.mubr.bf16.mxu0 %v309
    %492 = vmatmul.mubr.bf16.gmra.mrb[0].mxu0 %v308
    %v493 = vpop.f32.mrb[0].mxu0
    %v494 = vadd.f32 %v353, %v493
    %v495 = vpop.f32.mrb[0].mxu0
    %v496 = vpop.f32.mrb[0].mxu0
    %v497 = vadd.f32 %v353, %v496
    %v498 = vpop.f32.mrb[0].mxu0
    %499 = vmatprep.mubr.bf16.mxu0 %v311
    %500 = vmatmul.mubr.bf16.gmra.mrb[0].mxu0 %v310
    %v501 = vpop.f32.mrb[0].mxu0
    %v502 = vadd.f32 %v353, %v501
    %v503 = vpop.f32.mrb[0].mxu0
    %v504 = vpop.f32.mrb[0].mxu0
    %v505 = vadd.f32 %v353, %v504
    %v506 = vpop.f32.mrb[0].mxu0
    %507 = vmatprep.mubr.bf16.mxu0 %v313
    %508 = vmatmul.mubr.bf16.gmra.mrb[0].mxu0 %v312
    %v509 = vpop.f32.mrb[0].mxu0
    %v510 = vadd.f32 %v353, %v509
    %v511 = vpop.f32.mrb[0].mxu0
    %v512 = vpop.f32.mrb[0].mxu0
    %v513 = vadd.f32 %v353, %v512
    %v514 = vpop.f32.mrb[0].mxu0
    %515 = vmatprep.mubr.bf16.mxu0 %v315
    %516 = vmatmul.mubr.bf16.gmra.mrb[0].mxu0 %v314
    %v517 = vpop.f32.mrb[0].mxu0
    %v518 = vadd.f32 %v353, %v517
    %v519 = vpop.f32.mrb[0].mxu0
    %v520 = vpop.f32.mrb[0].mxu0
    %v521 = vadd.f32 %v353, %v520
    %v522 = vpop.f32.mrb[0].mxu0
    %523 = vdwg.mxu0
    %v524 = vxor.u32 %v486, 2147483648
    %v525 = vxor.u32 %v489, 2147483648
    %v526 = vxor.u32 %v494, 2147483648
    %v527 = vxor.u32 %v497, 2147483648
    %v528 = vxor.u32 %v502, 2147483648
    %v529 = vxor.u32 %v505, 2147483648
    %v530 = vxor.u32 %v510, 2147483648
    %v531 = vxor.u32 %v513, 2147483648
    %v532 = vxor.u32 %v518, 2147483648
    %v533 = vxor.u32 %v521, 2147483648
    %v534 = vmul.f32 %v524, 1.442695
    %v535 = vpow.pop %v534
    %v536 = vmul.f32 %v525, 1.442695
    %v537 = vpow.pop %v536
    %v538 = vmul.f32 %v526, 1.442695
    %v539 = vpow.pop %v538
    %v540 = vmul.f32 %v527, 1.442695
    %v541 = vpow.pop %v540
    %v542 = vmul.f32 %v528, 1.442695
    %v543 = vpow.pop %v542
    %v544 = vmul.f32 %v529, 1.442695
    %v545 = vpow.pop %v544
    %v546 = vmul.f32 %v530, 1.442695
    %v547 = vpow.pop %v546
    %v548 = vmul.f32 %v531, 1.442695
    %v549 = vpow.pop %v548
    %v550 = vmul.f32 %v532, 1.442695
    %v551 = vpow.pop %v550
    %v552 = vmul.f32 %v533, 1.442695
    %v553 = vpow.pop %v552
    %v554 = vadd.f32 %v535, 1.0
    %v555 = vadd.f32 %v537, 1.0
    %v556 = vadd.f32 %v539, 1.0
    %v557 = vadd.f32 %v541, 1.0
    %v558 = vadd.f32 %v543, 1.0
    %v559 = vadd.f32 %v545, 1.0
    %v560 = vadd.f32 %v547, 1.0
    %v561 = vadd.f32 %v549, 1.0
    %v562 = vadd.f32 %v551, 1.0
    %v563 = vadd.f32 %v553, 1.0
    %v564 = vrcp.pop %v554
    %v565 = vmul.f32 1.0, %v564
    %v566 = vrcp.pop %v555
    %v567 = vmul.f32 1.0, %v566
    %v568 = vrcp.pop %v556
    %v569 = vmul.f32 1.0, %v568
    %v570 = vrcp.pop %v557
    %v571 = vmul.f32 1.0, %v570
    %v572 = vrcp.pop %v558
    %v573 = vmul.f32 1.0, %v572
    %v574 = vrcp.pop %v559
    %v575 = vmul.f32 1.0, %v574
    %v576 = vrcp.pop %v560
    %v577 = vmul.f32 1.0, %v576
    %v578 = vrcp.pop %v561
    %v579 = vmul.f32 1.0, %v578
    %v580 = vrcp.pop %v562
    %v581 = vmul.f32 1.0, %v580
    %v582 = vrcp.pop %v563
    %v583 = vmul.f32 1.0, %v582
    %v584 = vld [vmem:[#allocation8] sm:$0xff]
    %v585 = vld [vmem:[#allocation8 + $0x8] sm:$0xff]
    %v586 = vld [vmem:[#allocation8 + $0x10] sm:$0xff]
    %v587 = vld [vmem:[#allocation8 + $0x18] sm:$0xff]
    %v588 = vld [vmem:[#allocation8 + $0x20] sm:$0xff]
    %v589 = vld [vmem:[#allocation8 + $0x28] sm:$0xff]
    %v590 = vld [vmem:[#allocation8 + $0x30] sm:$0xff]
    %v591 = vld [vmem:[#allocation8 + $0x38] sm:$0xff]
    %v592 = vld [vmem:[#allocation8 + $0x40] sm:$0xff]
    %v593 = vld [vmem:[#allocation8 + $0x48] sm:$0xff]
    %v594 = vmul.f32 %v584, %v565
    %v595 = vmul.f32 %v585, %v567
    %v596 = vmul.f32 %v586, %v569
    %v597 = vmul.f32 %v587, %v571
    %v598 = vmul.f32 %v588, %v573
    %v599 = vmul.f32 %v589, %v575
    %v600 = vmul.f32 %v590, %v577
    %v601 = vmul.f32 %v591, %v579
    %v602 = vmul.f32 %v592, %v581
    %v603 = vmul.f32 %v593, %v583
    %604 = vst [vmem:[#allocation10] sm:$0xff] %v594
    %605 = vst [vmem:[#allocation10 + $0x8] sm:$0xff] %v595
    %606 = vst [vmem:[#allocation10 + $0x10] sm:$0xff] %v596
    %607 = vst [vmem:[#allocation10 + $0x18] sm:$0xff] %v597
    %608 = vst [vmem:[#allocation10 + $0x20] sm:$0xff] %v598
    %609 = vst [vmem:[#allocation10 + $0x28] sm:$0xff] %v599
    %610 = vst [vmem:[#allocation10 + $0x30] sm:$0xff] %v600
    %611 = vst [vmem:[#allocation10 + $0x38] sm:$0xff] %v601
    %612 = vst [vmem:[#allocation10 + $0x40] sm:$0xff] %v602
    %613 = vst [vmem:[#allocation10 + $0x48] sm:$0xff] %v603
    // Predicated region
    $region42: #{tpu_custom_call.1} parent=1 // pred_check
      _
    $region43: #{tpu_custom_call.1} parent=1 // pred_check_branch
      %615 = sbr.rel (0) target = $region45
    $region44: #{tpu_custom_call.1} parent=1 // pred_region
      %s617 = ssub.s32 1280, 1280
      %618 = vsyncadd [#allocation4], %s617
      %s619 = sshll.u32 [#allocation10], 4
      %s620 = int_to_ptr.vmem [resolvable:$true] %s619
      %625 = dma.vmem_to_hbm [thread:$0]  %s620, 1280, %s6, [#allocation4], 128, 128, 8
    $region45: #{tpu_custom_call.1} parent=1 // pred_fallthru
      _
    // Predicated region
    $region46: #{tpu_custom_call.1} parent=1 // pred_check
      _
    $region47: #{tpu_custom_call.1} parent=1 // pred_check_branch
      %627 = sbr.rel (0) target = $region49
    $region48: #{tpu_custom_call.1} parent=1 // pred_region
      %628 = dma.done [#allocation4], 1280
    $region49: #{tpu_custom_call.1} parent=1 // pred_fallthru
      _
    %629 = vsyncpa [#allocation3], 1
    %630 = vsyncpa [#allocation6], 1
    %631 = vsyncpa [#allocation9], 1
    %632 = vsyncpa [#allocation4], 1

// kernel: tpu_custom_call.1
$region0: #{tpu_custom_call.1}
  #allocation0 [shape = 'u32[]', space=smem, size = 0x4, offset = 0x4, fixed_abs, tag = 'smem constant byte address 0x4 - core index']
  #allocation1 [shape = 'u32[144,128]{1,0:T(1,128)}', space=vmem, size = 0x12000, scoped, tag = 'internal scratch']
  %s0 = inlined_call_operand.hbm [shape: f32[80,128], index: 0, kind: input, shape index: {}]
  %s1 = inlined_call_operand.hbm [shape: bf16[128,256], index: 1, kind: input, shape index: {}]
  %s2 = inlined_call_operand.vmem [shape: f32[1,256], index: 2, kind: input, shape index: {}]
  %s3 = inlined_call_operand.hbm [shape: bf16[256,128], index: 3, kind: input, shape index: {}]
  %s4 = inlined_call_operand.vmem [shape: f32[1,128], index: 4, kind: input, shape index: {}]
  %s5 = inlined_call_operand.hbm [shape: f32[80,128], index: 5, kind: input, shape index: {}]
  %s6 = inlined_call_operand.hbm [shape: f32[80,128], index: 6, kind: output, shape index: {}]
  %s7 = sld [smem:[#allocation0]]
  $region50: #{tpu_custom_call.1} parent=0
    _
  %s9 = ssub.s32 1, %s7
  %s10 = scalar_select 0, %s9, %s7
  $region1: #{tpu_custom_call.1} parent=0
    #allocation2 [shape = 'u8[40960]{0}', space=vmem, size = 0xa000, scoped, tag = 'input window, operand 0, single buffered']
    #allocation3 [shape = 's32[1]{0}', space=sflag, size = 0x4, scoped, tag = 'scoped memory for tpu_custom_call.1']
    #allocation4 [shape = 's32[1]{0}', space=sflag, size = 0x4, scoped, tag = 'scoped memory for tpu_custom_call.1']
    #allocation5 [shape = 'u8[65536]{0}', space=vmem, size = 0x10000, scoped, tag = 'input window, operand 1, single buffered']
    #allocation6 [shape = 's32[1]{0}', space=sflag, size = 0x4, scoped, tag = 'scoped memory for tpu_custom_call.1']
    #allocation7 [shape = 'u8[65536]{0}', space=vmem, size = 0x10000, scoped, tag = 'input window, operand 3, single buffered']
    #allocation8 [shape = 'u8[40960]{0}', space=vmem, size = 0xa000, scoped, tag = 'input window, operand 5, single buffered']
    #allocation9 [shape = 's32[1]{0}', space=sflag, size = 0x4, scoped, tag = 'scoped memory for tpu_custom_call.1']
    #allocation10 [shape = 'u8[40960]{0}', space=vmem, size = 0xa000, scoped, tag = 'output window, operand 0, single buffered']
    %11 = vsyncpa [#allocation3], 0
    %12 = vsyncpa [#allocation6], 0
    %13 = vsyncpa [#allocation9], 0
    %14 = vsyncpa [#allocation4], 0
    // Predicated region
    $region2: #{tpu_custom_call.1} parent=1 // pred_check
      _
    $region3: #{tpu_custom_call.1} parent=1 // pred_check_branch
      %16 = sbr.rel (0) target = $region5
    $region4: #{tpu_custom_call.1} parent=1 // pred_region
      %s18 = ssub.s32 1280, 1280
      %19 = vsyncadd [#allocation3], %s18
      %s20 = sshll.u32 [#allocation2], 4
      %s21 = int_to_ptr.vmem [resolvable:$true] %s20
      %26 = dma.hbm_to_vmem [thread:$0]  %s0, 1280, %s21, [#allocation3], 128, 128, 8
    $region5: #{tpu_custom_call.1} parent=1 // pred_fallthru
      _
    // Predicated region
    $region6: #{tpu_custom_call.1} parent=1 // pred_check
      _
    $region7: #{tpu_custom_call.1} parent=1 // pred_check_branch
      %28 = sbr.rel (0) target = $region9
    $region8: #{tpu_custom_call.1} parent=1 // pred_region
      %s30 = ssub.s32 2048, 2048
      %31 = vsyncadd [#allocation6], %s30
      %s32 = sshll.u32 [#allocation5], 4
      %s33 = int_to_ptr.vmem [resolvable:$true] %s32
      %38 = dma.hbm_to_vmem [thread:$0]  %s1, 2048, %s33, [#allocation6], 128, 128, 8
    $region9: #{tpu_custom_call.1} parent=1 // pred_fallthru
      _
    // Predicated region
    $region10: #{tpu_custom_call.1} parent=1 // pred_check
      _
    $region11: #{tpu_custom_call.1} parent=1 // pred_check_branch
      %40 = sbr.rel (0) target = $region13
    $region12: #{tpu_custom_call.1} parent=1 // pred_region
      _
    $region13: #{tpu_custom_call.1} parent=1 // pred_fallthru
      _
    // Predicated region
    $region14: #{tpu_custom_call.1} parent=1 // pred_check
      _
    $region15: #{tpu_custom_call.1} parent=1 // pred_check_branch
      %42 = sbr.rel (0) target = $region17
    $region16: #{tpu_custom_call.1} parent=1 // pred_region
      %s44 = ssub.s32 2048, 2048
      %45 = vsyncadd [#allocation6], %s44
      %s46 = sshll.u32 [#allocation7], 4
      %s47 = int_to_ptr.vmem [resolvable:$true] %s46
      %52 = dma.hbm_to_vmem [thread:$0]  %s3, 2048, %s47, [#allocation6], 64, 64, 4
    $region17: #{tpu_custom_call.1} parent=1 // pred_fallthru
      _
    // Predicated region
    $region18: #{tpu_custom_call.1} parent=1 // pred_check
      _
    $region19: #{tpu_custom_call.1} parent=1 // pred_check_branch
      %54 = sbr.rel (0) target = $region21
    $region20: #{tpu_custom_call.1} parent=1 // pred_region
      _
    $region21: #{tpu_custom_call.1} parent=1 // pred_fallthru
      _
    // Predicated region
    $region22: #{tpu_custom_call.1} parent=1 // pred_check
      _
    $region23: #{tpu_custom_call.1} parent=1 // pred_check_branch
      %56 = sbr.rel (0) target = $region25
    $region24: #{tpu_custom_call.1} parent=1 // pred_region
      %s58 = ssub.s32 1280, 1280
      %59 = vsyncadd [#allocation9], %s58
      %s60 = sshll.u32 [#allocation8], 4
      %s61 = int_to_ptr.vmem [resolvable:$true] %s60
      %66 = dma.hbm_to_vmem [thread:$0]  %s5, 1280, %s61, [#allocation9], 128, 128, 8
    $region25: #{tpu_custom_call.1} parent=1 // pred_fallthru
      _
    // Predicated region
    $region26: #{tpu_custom_call.1} parent=1 // pred_check
      _
    $region27: #{tpu_custom_call.1} parent=1 // pred_check_branch
      %68 = sbr.rel (0) target = $region29
    $region28: #{tpu_custom_call.1} parent=1 // pred_region
      %69 = dma.done [#allocation3], 1280
    $region29: #{tpu_custom_call.1} parent=1 // pred_fallthru
      _
    // Predicated region
    $region30: #{tpu_custom_call.1} parent=1 // pred_check
      _
    $region31: #{tpu_custom_call.1} parent=1 // pred_check_branch
      %71 = sbr.rel (0) target = $region33
    $region32: #{tpu_custom_call.1} parent=1 // pred_region
      %72 = dma.done [#allocation6], 2048
    $region33: #{tpu_custom_call.1} parent=1 // pred_fallthru
      _
    // Predicated region
    $region34: #{tpu_custom_call.1} parent=1 // pred_check
      _
    $region35: #{tpu_custom_call.1} parent=1 // pred_check_branch
      %74 = sbr.rel (0) target = $region37
    $region36: #{tpu_custom_call.1} parent=1 // pred_region
      %75 = dma.done [#allocation6], 2048
    $region37: #{tpu_custom_call.1} parent=1 // pred_fallthru
      _
    // Predicated region
    $region38: #{tpu_custom_call.1} parent=1 // pred_check
      _
    $region39: #{tpu_custom_call.1} parent=1 // pred_check_branch
      %77 = sbr.rel (0) target = $region41
    $region40: #{tpu_custom_call.1} parent=1 // pred_region
      %78 = dma.done [#allocation9], 1280
    $region41: #{tpu_custom_call.1} parent=1 // pred_fallthru
      _
    %v80 = vld [vmem:[#allocation2] sm:$0xff]
    %v81 = vld [vmem:[#allocation2 + $0x8] sm:$0xff]
    %v82 = vld [vmem:[#allocation2 + $0x10] sm:$0xff]
    %v83 = vld [vmem:[#allocation2 + $0x18] sm:$0xff]
    %v84 = vld [vmem:[#allocation2 + $0x20] sm:$0xff]
    %v85 = vld [vmem:[#allocation2 + $0x28] sm:$0xff]
    %v86 = vld [vmem:[#allocation2 + $0x30] sm:$0xff]
    %v87 = vld [vmem:[#allocation2 + $0x38] sm:$0xff]
    %v88 = vld [vmem:[#allocation2 + $0x40] sm:$0xff]
    %v89 = vld [vmem:[#allocation2 + $0x48] sm:$0xff]
    %v90 = vpack.c.bf16 %v81, %v80
    %v91 = vpack.c.bf16 %v83, %v82
    %v92 = vpack.c.bf16 %v85, %v84
    %v93 = vpack.c.bf16 %v87, %v86
    %v94 = vpack.c.bf16 %v89, %v88
    %v95 = vld [vmem:[#allocation5] sm:$0xff]
    %v96 = vld [vmem:[#allocation5 + $0x8] sm:$0xff]
    %v97 = vld [vmem:[#allocation5 + $0x10] sm:$0xff]
    %v98 = vld [vmem:[#allocation5 + $0x18] sm:$0xff]
    %v99 = vld [vmem:[#allocation5 + $0x20] sm:$0xff]
    %v100 = vld [vmem:[#allocation5 + $0x28] sm:$0xff]
    %v101 = vld [vmem:[#allocation5 + $0x30] sm:$0xff]
    %v102 = vld [vmem:[#allocation5 + $0x38] sm:$0xff]
    %v103 = vld [vmem:[#allocation5 + $0x40] sm:$0xff]
    %v104 = vld [vmem:[#allocation5 + $0x48] sm:$0xff]
    %v105 = vld [vmem:[#allocation5 + $0x50] sm:$0xff]
    %v106 = vld [vmem:[#allocation5 + $0x58] sm:$0xff]
    %v107 = vld [vmem:[#allocation5 + $0x60] sm:$0xff]
    %v108 = vld [vmem:[#allocation5 + $0x68] sm:$0xff]
    %v109 = vld [vmem:[#allocation5 + $0x70] sm:$0xff]
    %v110 = vld [vmem:[#allocation5 + $0x78] sm:$0xff]
    %v111 = vld [vmem:[%s2] sm:$0x3]
    %v113 = vlaneseq
    %v114 = vshrl.u32 %v113, 7
    %v115 = vsub.s32 0, %v114
    %v116 = vrot.slane %v111, %v115
    %v117 = vlaneseq
    %v118 = vshrl.u32 %v117, 7
    %v119 = vsub.s32 1, %v118
    %v120 = vrot.slane %v111, %v119
    %v139 = vunpack.c.l.b16 %v95
    %v140 = vunpack.c.h.b16 %v95
    %v141 = vunpack.c.l.b16 %v96
    %v142 = vunpack.c.h.b16 %v96
    %v143 = vunpack.c.l.b16 %v97
    %v144 = vunpack.c.h.b16 %v97
    %v145 = vunpack.c.l.b16 %v98
    %v146 = vunpack.c.h.b16 %v98
    %v147 = vunpack.c.l.b16 %v99
    %v148 = vunpack.c.h.b16 %v99
    %v149 = vunpack.c.l.b16 %v100
    %v150 = vunpack.c.h.b16 %v100
    %v151 = vunpack.c.l.b16 %v101
    %v152 = vunpack.c.h.b16 %v101
    %v153 = vunpack.c.l.b16 %v102
    %v154 = vunpack.c.h.b16 %v102
    %v155 = vunpack.c.l.b16 %v103
    %v156 = vunpack.c.h.b16 %v103
    %v157 = vunpack.c.l.b16 %v104
    %v158 = vunpack.c.h.b16 %v104
    %v159 = vunpack.c.l.b16 %v105
    %v160 = vunpack.c.h.b16 %v105
    %v161 = vunpack.c.l.b16 %v106
    %v162 = vunpack.c.h.b16 %v106
    %v163 = vunpack.c.l.b16 %v107
    %v164 = vunpack.c.h.b16 %v107
    %v165 = vunpack.c.l.b16 %v108
    %v166 = vunpack.c.h.b16 %v108
    %v167 = vunpack.c.l.b16 %v109
    %v168 = vunpack.c.h.b16 %v109
    %v169 = vunpack.c.l.b16 %v110
    %v170 = vunpack.c.h.b16 %v110
    %v171 = vpack.c.b16 %v141, %v139
    %v172 = vpack.c.b16 %v142, %v140
    %v173 = vpack.c.b16 %v145, %v143
    %v174 = vpack.c.b16 %v146, %v144
    %v175 = vpack.c.b16 %v149, %v147
    %v176 = vpack.c.b16 %v150, %v148
    %v177 = vpack.c.b16 %v153, %v151
    %v178 = vpack.c.b16 %v154, %v152
    %v179 = vpack.c.b16 %v157, %v155
    %v180 = vpack.c.b16 %v158, %v156
    %v181 = vpack.c.b16 %v161, %v159
    %v182 = vpack.c.b16 %v162, %v160
    %v183 = vpack.c.b16 %v165, %v163
    %v184 = vpack.c.b16 %v166, %v164
    %v185 = vpack.c.b16 %v169, %v167
    %v186 = vpack.c.b16 %v170, %v168
    %203 = vmatprep.subr.bf16.mxu0 %v172
    %204 = vmatpush1.bf16.msra.mxu0 %v171
    %205 = vmatprep.subr.bf16.mxu0 %v174
    %206 = vmatpush1.bf16.msra.mxu0 %v173
    %207 = vmatprep.subr.bf16.mxu0 %v176
    %208 = vmatpush1.bf16.msra.mxu0 %v175
    %209 = vmatprep.subr.bf16.mxu0 %v178
    %210 = vmatpush1.bf16.msra.mxu0 %v177
    %211 = vmatprep.subr.bf16.mxu0 %v180
    %212 = vmatpush1.bf16.msra.mxu0 %v179
    %213 = vmatprep.subr.bf16.mxu0 %v182
    %214 = vmatpush1.bf16.msra.mxu0 %v181
    %215 = vmatprep.subr.bf16.mxu0 %v184
    %216 = vmatpush1.bf16.msra.mxu0 %v183
    %217 = vmatprep.subr.bf16.mxu0 %v186
    %218 = vmatpush1.bf16.msra.mxu0 %v185
    %219 = vmatprep.subr.bf16.mxu0 0
    %220 = vmatpush1.bf16.msra.mxu0 0
    %221 = vmatprep.subr.bf16.mxu0 0
    %222 = vmatpush1.bf16.msra.mxu0 0
    %223 = vmatprep.subr.bf16.mxu0 0
    %224 = vmatpush1.bf16.msra.mxu0 0
    %225 = vmatprep.subr.bf16.mxu0 0
    %226 = vmatpush1.bf16.msra.mxu0 0
    %227 = vmatprep.subr.bf16.mxu0 0
    %228 = vmatpush1.bf16.msra.mxu0 0
    %229 = vmatprep.subr.bf16.mxu0 0
    %230 = vmatpush1.bf16.msra.mxu0 0
    %231 = vmatprep.subr.bf16.mxu0 0
    %232 = vmatpush1.bf16.msra.mxu0 0
    %233 = vmatprep.subr.bf16.mxu0 0
    %234 = vmatpush1.bf16.msra.mxu0 0
    %235 = vmatprep.mubr.bf16.mxu0 0
    %236 = vmatmul.mubr.bf16.gmra.mrb[0].mxu0 %v90
    %v237 = vpop.f32.mrb[0].mxu0
    %v238 = vadd.f32 %v116, %v237
    %v239 = vpop.f32.mrb[0].mxu0
    %v240 = vadd.f32 %v120, %v239
    %v241 = vpop.f32.mrb[0].mxu0
    %v242 = vadd.f32 %v116, %v241
    %v243 = vpop.f32.mrb[0].mxu0
    %v244 = vadd.f32 %v120, %v243
    %245 = vmatprep.mubr.bf16.mxu0 0
    %246 = vmatmul.mubr.bf16.gmra.mrb[0].mxu0 %v91
    %v247 = vpop.f32.mrb[0].mxu0
    %v248 = vadd.f32 %v116, %v247
    %v249 = vpop.f32.mrb[0].mxu0
    %v250 = vadd.f32 %v120, %v249
    %v251 = vpop.f32.mrb[0].mxu0
    %v252 = vadd.f32 %v116, %v251
    %v253 = vpop.f32.mrb[0].mxu0
    %v254 = vadd.f32 %v120, %v253
    %255 = vmatprep.mubr.bf16.mxu0 0
    %256 = vmatmul.mubr.bf16.gmra.mrb[0].mxu0 %v92
    %v257 = vpop.f32.mrb[0].mxu0
    %v258 = vadd.f32 %v116, %v257
    %v259 = vpop.f32.mrb[0].mxu0
    %v260 = vadd.f32 %v120, %v259
    %v261 = vpop.f32.mrb[0].mxu0
    %v262 = vadd.f32 %v116, %v261
    %v263 = vpop.f32.mrb[0].mxu0
    %v264 = vadd.f32 %v120, %v263
    %265 = vmatprep.mubr.bf16.mxu0 0
    %266 = vmatmul.mubr.bf16.gmra.mrb[0].mxu0 %v93
    %v267 = vpop.f32.mrb[0].mxu0
    %v268 = vadd.f32 %v116, %v267
    %v269 = vpop.f32.mrb[0].mxu0
    %v270 = vadd.f32 %v120, %v269
    %v271 = vpop.f32.mrb[0].mxu0
    %v272 = vadd.f32 %v116, %v271
    %v273 = vpop.f32.mrb[0].mxu0
    %v274 = vadd.f32 %v120, %v273
    %275 = vmatprep.mubr.bf16.mxu0 0
    %276 = vmatmul.mubr.bf16.gmra.mrb[0].mxu0 %v94
    %v277 = vpop.f32.mrb[0].mxu0
    %v278 = vadd.f32 %v116, %v277
    %v279 = vpop.f32.mrb[0].mxu0
    %v280 = vadd.f32 %v120, %v279
    %v281 = vpop.f32.mrb[0].mxu0
    %v282 = vadd.f32 %v116, %v281
    %v283 = vpop.f32.mrb[0].mxu0
    %v284 = vadd.f32 %v120, %v283
    %285 = vdwg.mxu0
    %v286 = vmax.f32 %v238, 0.0
    %v287 = vmax.f32 %v240, 0.0
    %v288 = vmax.f32 %v242, 0.0
    %v289 = vmax.f32 %v244, 0.0
    %v290 = vmax.f32 %v248, 0.0
    %v291 = vmax.f32 %v250, 0.0
    %v292 = vmax.f32 %v252, 0.0
    %v293 = vmax.f32 %v254, 0.0
    %v294 = vmax.f32 %v258, 0.0
    %v295 = vmax.f32 %v260, 0.0
    %v296 = vmax.f32 %v262, 0.0
    %v297 = vmax.f32 %v264, 0.0
    %v298 = vmax.f32 %v268, 0.0
    %v299 = vmax.f32 %v270, 0.0
    %v300 = vmax.f32 %v272, 0.0
    %v301 = vmax.f32 %v274, 0.0
    %v302 = vmax.f32 %v278, 0.0
    %v303 = vmax.f32 %v280, 0.0
    %v304 = vmax.f32 %v282, 0.0
    %v305 = vmax.f32 %v284, 0.0
    %v306 = vpack.c.bf16 %v288, %v286
    %v307 = vpack.c.bf16 %v289, %v287
    %v308 = vpack.c.bf16 %v292, %v290
    %v309 = vpack.c.bf16 %v293, %v291
    %v310 = vpack.c.bf16 %v296, %v294
    %v311 = vpack.c.bf16 %v297, %v295
    %v312 = vpack.c.bf16 %v300, %v298
    %v313 = vpack.c.bf16 %v301, %v299
    %v314 = vpack.c.bf16 %v304, %v302
    %v315 = vpack.c.bf16 %v305, %v303
    %v316 = vld [vmem:[#allocation7] sm:$0xf]
    %v317 = vld [vmem:[#allocation7 + $0x4] sm:$0xf]
    %v318 = vld [vmem:[#allocation7 + $0x8] sm:$0xf]
    %v319 = vld [vmem:[#allocation7 + $0xc] sm:$0xf]
    %v320 = vld [vmem:[#allocation7 + $0x10] sm:$0xf]
    %v321 = vld [vmem:[#allocation7 + $0x14] sm:$0xf]
    %v322 = vld [vmem:[#allocation7 + $0x18] sm:$0xf]
    %v323 = vld [vmem:[#allocation7 + $0x1c] sm:$0xf]
    %v324 = vld [vmem:[#allocation7 + $0x20] sm:$0xf]
    %v325 = vld [vmem:[#allocation7 + $0x24] sm:$0xf]
    %v326 = vld [vmem:[#allocation7 + $0x28] sm:$0xf]
    %v327 = vld [vmem:[#allocation7 + $0x2c] sm:$0xf]
    %v328 = vld [vmem:[#allocation7 + $0x30] sm:$0xf]
    %v329 = vld [vmem:[#allocation7 + $0x34] sm:$0xf]
    %v330 = vld [vmem:[#allocation7 + $0x38] sm:$0xf]
    %v331 = vld [vmem:[#allocation7 + $0x3c] sm:$0xf]
    %v332 = vld [vmem:[#allocation7 + $0x40] sm:$0xf]
    %v333 = vld [vmem:[#allocation7 + $0x44] sm:$0xf]
    %v334 = vld [vmem:[#allocation7 + $0x48] sm:$0xf]
    %v335 = vld [vmem:[#allocation7 + $0x4c] sm:$0xf]
    %v336 = vld [vmem:[#allocation7 + $0x50] sm:$0xf]
    %v337 = vld [vmem:[#allocation7 + $0x54] sm:$0xf]
    %v338 = vld [vmem:[#allocation7 + $0x58] sm:$0xf]
    %v339 = vld [vmem:[#allocation7 + $0x5c] sm:$0xf]
    %v340 = vld [vmem:[#allocation7 + $0x60] sm:$0xf]
    %v341 = vld [vmem:[#allocation7 + $0x64] sm:$0xf]
    %v342 = vld [vmem:[#allocation7 + $0x68] sm:$0xf]
    %v343 = vld [vmem:[#allocation7 + $0x6c] sm:$0xf]
    %v344 = vld [vmem:[#allocation7 + $0x70] sm:$0xf]
    %v345 = vld [vmem:[#allocation7 + $0x74] sm:$0xf]
    %v346 = vld [vmem:[#allocation7 + $0x78] sm:$0xf]
    %v347 = vld [vmem:[#allocation7 + $0x7c] sm:$0xf]
    %v348 = vld [vmem:[%s4] sm:$0x1]
    %v350 = vlaneseq
    %v351 = vshrl.u32 %v350, 7
    %v352 = vsub.s32 0, %v351
    %v353 = vrot.slane %v348, %v352
    %v387 = vunpack.c.l.b16 %v316
    %v388 = vunpack.c.l.b16 %v317
    %v389 = vunpack.c.l.b16 %v318
    %v390 = vunpack.c.l.b16 %v319
    %v391 = vunpack.c.l.b16 %v320
    %v392 = vunpack.c.l.b16 %v321
    %v393 = vunpack.c.l.b16 %v322
    %v394 = vunpack.c.l.b16 %v323
    %v395 = vunpack.c.l.b16 %v324
    %v396 = vunpack.c.l.b16 %v325
    %v397 = vunpack.c.l.b16 %v326
    %v398 = vunpack.c.l.b16 %v327
    %v399 = vunpack.c.l.b16 %v328
    %v400 = vunpack.c.l.b16 %v329
    %v401 = vunpack.c.l.b16 %v330
    %v402 = vunpack.c.l.b16 %v331
    %v403 = vunpack.c.l.b16 %v332
    %v404 = vunpack.c.l.b16 %v333
    %v405 = vunpack.c.l.b16 %v334
    %v406 = vunpack.c.l.b16 %v335
    %v407 = vunpack.c.l.b16 %v336
    %v408 = vunpack.c.l.b16 %v337
    %v409 = vunpack.c.l.b16 %v338
    %v410 = vunpack.c.l.b16 %v339
    %v411 = vunpack.c.l.b16 %v340
    %v412 = vunpack.c.l.b16 %v341
    %v413 = vunpack.c.l.b16 %v342
    %v414 = vunpack.c.l.b16 %v343
    %v415 = vunpack.c.l.b16 %v344
    %v416 = vunpack.c.l.b16 %v345
    %v417 = vunpack.c.l.b16 %v346
    %v418 = vunpack.c.l.b16 %v347
    %v419 = vpack.c.b16 %v388, %v387
    %v420 = vpack.c.b16 %v390, %v389
    %v421 = vpack.c.b16 %v392, %v391
    %v422 = vpack.c.b16 %v394, %v393
    %v423 = vpack.c.b16 %v396, %v395
    %v424 = vpack.c.b16 %v398, %v397
    %v425 = vpack.c.b16 %v400, %v399
    %v426 = vpack.c.b16 %v402, %v401
    %v427 = vpack.c.b16 %v404, %v403
    %v428 = vpack.c.b16 %v406, %v405
    %v429 = vpack.c.b16 %v408, %v407
    %v430 = vpack.c.b16 %v410, %v409
    %v431 = vpack.c.b16 %v412, %v411
    %v432 = vpack.c.b16 %v414, %v413
    %v433 = vpack.c.b16 %v416, %v415
    %v434 = vpack.c.b16 %v418, %v417
    %451 = vmatprep.subr.bf16.mxu0 0
    %452 = vmatpush1.bf16.msra.mxu0 %v419
    %453 = vmatprep.subr.bf16.mxu0 0
    %454 = vmatpush1.bf16.msra.mxu0 %v420
    %455 = vmatprep.subr.bf16.mxu0 0
    %456 = vmatpush1.bf16.msra.mxu0 %v421
    %457 = vmatprep.subr.bf16.mxu0 0
    %458 = vmatpush1.bf16.msra.mxu0 %v422
    %459 = vmatprep.subr.bf16.mxu0 0
    %460 = vmatpush1.bf16.msra.mxu0 %v423
    %461 = vmatprep.subr.bf16.mxu0 0
    %462 = vmatpush1.bf16.msra.mxu0 %v424
    %463 = vmatprep.subr.bf16.mxu0 0
    %464 = vmatpush1.bf16.msra.mxu0 %v425
    %465 = vmatprep.subr.bf16.mxu0 0
    %466 = vmatpush1.bf16.msra.mxu0 %v426
    %467 = vmatprep.subr.bf16.mxu0 0
    %468 = vmatpush1.bf16.msra.mxu0 %v427
    %469 = vmatprep.subr.bf16.mxu0 0
    %470 = vmatpush1.bf16.msra.mxu0 %v428
    %471 = vmatprep.subr.bf16.mxu0 0
    %472 = vmatpush1.bf16.msra.mxu0 %v429
    %473 = vmatprep.subr.bf16.mxu0 0
    %474 = vmatpush1.bf16.msra.mxu0 %v430
    %475 = vmatprep.subr.bf16.mxu0 0
    %476 = vmatpush1.bf16.msra.mxu0 %v431
    %477 = vmatprep.subr.bf16.mxu0 0
    %478 = vmatpush1.bf16.msra.mxu0 %v432
    %479 = vmatprep.subr.bf16.mxu0 0
    %480 = vmatpush1.bf16.msra.mxu0 %v433
    %481 = vmatprep.subr.bf16.mxu0 0
    %482 = vmatpush1.bf16.msra.mxu0 %v434
    %483 = vmatprep.mubr.bf16.mxu0 %v307
    %484 = vmatmul.mubr.bf16.gmra.mrb[0].mxu0 %v306
    %v485 = vpop.f32.mrb[0].mxu0
    %v486 = vadd.f32 %v353, %v485
    %v487 = vpop.f32.mrb[0].mxu0
    %v488 = vpop.f32.mrb[0].mxu0
    %v489 = vadd.f32 %v353, %v488
    %v490 = vpop.f32.mrb[0].mxu0
    %491 = vmatprep.mubr.bf16.mxu0 %v309
    %492 = vmatmul.mubr.bf16.gmra.mrb[0].mxu0 %v308
    %v493 = vpop.f32.mrb[0].mxu0
    %v494 = vadd.f32 %v353, %v493
    %v495 = vpop.f32.mrb[0].mxu0
    %v496 = vpop.f32.mrb[0].mxu0
    %v497 = vadd.f32 %v353, %v496
    %v498 = vpop.f32.mrb[0].mxu0
    %499 = vmatprep.mubr.bf16.mxu0 %v311
    %500 = vmatmul.mubr.bf16.gmra.mrb[0].mxu0 %v310
    %v501 = vpop.f32.mrb[0].mxu0
    %v502 = vadd.f32 %v353, %v501
    %v503 = vpop.f32.mrb[0].mxu0
    %v504 = vpop.f32.mrb[0].mxu0
    %v505 = vadd.f32 %v353, %v504
    %v506 = vpop.f32.mrb[0].mxu0
    %507 = vmatprep.mubr.bf16.mxu0 %v313
    %508 = vmatmul.mubr.bf16.gmra.mrb[0].mxu0 %v312
    %v509 = vpop.f32.mrb[0].mxu0
    %v510 = vadd.f32 %v353, %v509
    %v511 = vpop.f32.mrb[0].mxu0
    %v512 = vpop.f32.mrb[0].mxu0
    %v513 = vadd.f32 %v353, %v512
    %v514 = vpop.f32.mrb[0].mxu0
    %515 = vmatprep.mubr.bf16.mxu0 %v315
    %516 = vmatmul.mubr.bf16.gmra.mrb[0].mxu0 %v314
    %v517 = vpop.f32.mrb[0].mxu0
    %v518 = vadd.f32 %v353, %v517
    %v519 = vpop.f32.mrb[0].mxu0
    %v520 = vpop.f32.mrb[0].mxu0
    %v521 = vadd.f32 %v353, %v520
    %v522 = vpop.f32.mrb[0].mxu0
    %523 = vdwg.mxu0
    %v524 = vxor.u32 %v486, 2147483648
    %v525 = vxor.u32 %v489, 2147483648
    %v526 = vxor.u32 %v494, 2147483648
    %v527 = vxor.u32 %v497, 2147483648
    %v528 = vxor.u32 %v502, 2147483648
    %v529 = vxor.u32 %v505, 2147483648
    %v530 = vxor.u32 %v510, 2147483648
    %v531 = vxor.u32 %v513, 2147483648
    %v532 = vxor.u32 %v518, 2147483648
    %v533 = vxor.u32 %v521, 2147483648
    %v534 = vmul.f32 %v524, 1.442695
    %v535 = vpow.pop %v534
    %v536 = vmul.f32 %v525, 1.442695
    %v537 = vpow.pop %v536
    %v538 = vmul.f32 %v526, 1.442695
    %v539 = vpow.pop %v538
    %v540 = vmul.f32 %v527, 1.442695
    %v541 = vpow.pop %v540
    %v542 = vmul.f32 %v528, 1.442695
    %v543 = vpow.pop %v542
    %v544 = vmul.f32 %v529, 1.442695
    %v545 = vpow.pop %v544
    %v546 = vmul.f32 %v530, 1.442695
    %v547 = vpow.pop %v546
    %v548 = vmul.f32 %v531, 1.442695
    %v549 = vpow.pop %v548
    %v550 = vmul.f32 %v532, 1.442695
    %v551 = vpow.pop %v550
    %v552 = vmul.f32 %v533, 1.442695
    %v553 = vpow.pop %v552
    %v554 = vadd.f32 %v535, 1.0
    %v555 = vadd.f32 %v537, 1.0
    %v556 = vadd.f32 %v539, 1.0
    %v557 = vadd.f32 %v541, 1.0
    %v558 = vadd.f32 %v543, 1.0
    %v559 = vadd.f32 %v545, 1.0
    %v560 = vadd.f32 %v547, 1.0
    %v561 = vadd.f32 %v549, 1.0
    %v562 = vadd.f32 %v551, 1.0
    %v563 = vadd.f32 %v553, 1.0
    %v564 = vrcp.pop %v554
    %v565 = vmul.f32 1.0, %v564
    %v566 = vrcp.pop %v555
    %v567 = vmul.f32 1.0, %v566
    %v568 = vrcp.pop %v556
    %v569 = vmul.f32 1.0, %v568
    %v570 = vrcp.pop %v557
    %v571 = vmul.f32 1.0, %v570
    %v572 = vrcp.pop %v558
    %v573 = vmul.f32 1.0, %v572
    %v574 = vrcp.pop %v559
    %v575 = vmul.f32 1.0, %v574
    %v576 = vrcp.pop %v560
    %v577 = vmul.f32 1.0, %v576
    %v578 = vrcp.pop %v561
    %v579 = vmul.f32 1.0, %v578
    %v580 = vrcp.pop %v562
    %v581 = vmul.f32 1.0, %v580
    %v582 = vrcp.pop %v563
    %v583 = vmul.f32 1.0, %v582
    %v584 = vld [vmem:[#allocation8] sm:$0xff]
    %v585 = vld [vmem:[#allocation8 + $0x8] sm:$0xff]
    %v586 = vld [vmem:[#allocation8 + $0x10] sm:$0xff]
    %v587 = vld [vmem:[#allocation8 + $0x18] sm:$0xff]
    %v588 = vld [vmem:[#allocation8 + $0x20] sm:$0xff]
    %v589 = vld [vmem:[#allocation8 + $0x28] sm:$0xff]
    %v590 = vld [vmem:[#allocation8 + $0x30] sm:$0xff]
    %v591 = vld [vmem:[#allocation8 + $0x38] sm:$0xff]
    %v592 = vld [vmem:[#allocation8 + $0x40] sm:$0xff]
    %v593 = vld [vmem:[#allocation8 + $0x48] sm:$0xff]
    %v594 = vmul.f32 %v584, %v565
    %v595 = vmul.f32 %v585, %v567
    %v596 = vmul.f32 %v586, %v569
    %v597 = vmul.f32 %v587, %v571
    %v598 = vmul.f32 %v588, %v573
    %v599 = vmul.f32 %v589, %v575
    %v600 = vmul.f32 %v590, %v577
    %v601 = vmul.f32 %v591, %v579
    %v602 = vmul.f32 %v592, %v581
    %v603 = vmul.f32 %v593, %v583
    %604 = vst [vmem:[#allocation10] sm:$0xff] %v594
    %605 = vst [vmem:[#allocation10 + $0x8] sm:$0xff] %v595
    %606 = vst [vmem:[#allocation10 + $0x10] sm:$0xff] %v596
    %607 = vst [vmem:[#allocation10 + $0x18] sm:$0xff] %v597
    %608 = vst [vmem:[#allocation10 + $0x20] sm:$0xff] %v598
    %609 = vst [vmem:[#allocation10 + $0x28] sm:$0xff] %v599
    %610 = vst [vmem:[#allocation10 + $0x30] sm:$0xff] %v600
    %611 = vst [vmem:[#allocation10 + $0x38] sm:$0xff] %v601
    %612 = vst [vmem:[#allocation10 + $0x40] sm:$0xff] %v602
    %613 = vst [vmem:[#allocation10 + $0x48] sm:$0xff] %v603
    // Predicated region
    $region42: #{tpu_custom_call.1} parent=1 // pred_check
      _
    $region43: #{tpu_custom_call.1} parent=1 // pred_check_branch
      %615 = sbr.rel (0) target = $region45
    $region44: #{tpu_custom_call.1} parent=1 // pred_region
      %s617 = ssub.s32 1280, 1280
      %618 = vsyncadd [#allocation4], %s617
      %s619 = sshll.u32 [#allocation10], 4
      %s620 = int_to_ptr.vmem [resolvable:$true] %s619
      %625 = dma.vmem_to_hbm [thread:$0]  %s620, 1280, %s6, [#allocation4], 128, 128, 8
    $region45: #{tpu_custom_call.1} parent=1 // pred_fallthru
      _
    // Predicated region
    $region46: #{tpu_custom_call.1} parent=1 // pred_check
      _
    $region47: #{tpu_custom_call.1} parent=1 // pred_check_branch
      %627 = sbr.rel (0) target = $region49
    $region48: #{tpu_custom_call.1} parent=1 // pred_region
      %628 = dma.done [#allocation4], 1280
    $region49: #{tpu_custom_call.1} parent=1 // pred_fallthru
      _
    %629 = vsyncpa [#allocation3], 1
    %630 = vsyncpa [#allocation6], 1
    %631 = vsyncpa [#allocation9], 1
    %632 = vsyncpa [#allocation4], 1

</llo_original>
